<compile_context>
chip_gen: v5e
topology: v5e:2x2
jax: 0.10.0
libtpu: 0.0.40
codegen_flags: <defaults>
</compile_context>

<pallas_src>
import math

import jax
import jax.numpy as jnp
from jax.experimental import pallas as pl
from jax.experimental.pallas import tpu as pltpu


def _diag_gaussian_kernel(eps_ref, loc_ref, log_scale_ref, z_ref, logp_ref):
    # eps_ref:       (TILE_N, D)  standard normal noise
    # loc_ref:       (1, D)       mean parameter (broadcast over batch)
    # log_scale_ref: (1, D)       log std parameter (broadcast over batch)
    # z_ref:         (TILE_N, D)  samples
    # logp_ref:      (TILE_N, 1)  per-sample log probability
    eps = eps_ref[...]
    loc = loc_ref[...]
    log_scale = log_scale_ref[...]

    # Sample: z = loc + exp(log_scale) * eps   (VPU elementwise, exp on EUP)
    scale = jnp.exp(log_scale)                     # (1, D)
    z_ref[...] = loc + scale * eps

    # Log prob: hoist the log_scale sum (constant per tile) out of the
    # per-sample reduction; the remaining eps^2 reduce is a lane-axis XLU sum.
    d = eps.shape[1]
    const = -0.5 * d * math.log(2.0 * math.pi)
    sum_ls = jnp.sum(log_scale)                    # scalar
    logp_ref[...] = (const - sum_ls) - 0.5 * jnp.sum(
        eps * eps, axis=1, keepdims=True
    )


def diag_gaussian_forward(eps, loc, log_scale, *, tile_n=512):
    """eps: (N, *shape); loc, log_scale: (1, *shape). Returns (z, log_p)."""
    n = eps.shape[0]
    event_shape = eps.shape[1:]
    d = 1
    for s in event_shape:
        d *= s

    eps2d = eps.reshape(n, d).astype(jnp.float32)
    loc2d = loc.reshape(1, d).astype(jnp.float32)
    ls2d = log_scale.reshape(1, d).astype(jnp.float32)

    # Choose batch tile: large for pipelining, but no bigger than the
    # (sublane-aligned) padded batch for small inputs.
    tile = min(tile_n, max(8, ((n + 7) // 8) * 8))
    tile = ((tile + 7) // 8) * 8
    n_pad = ((n + tile - 1) // tile) * tile
    if n_pad != n:
        eps2d = jnp.pad(eps2d, ((0, n_pad - n), (0, 0)))  # zero rows: finite math

    grid = (n_pad // tile,)

    z2d, logp2d = pl.pallas_call(
        _diag_gaussian_kernel,
        out_shape=(
            jax.ShapeDtypeStruct((n_pad, d), jnp.float32),
            jax.ShapeDtypeStruct((n_pad, 1), jnp.float32),
        ),
        grid_spec=pltpu.PrefetchScalarGridSpec(
            num_scalar_prefetch=0,
            grid=grid,
            in_specs=[
                pl.BlockSpec((tile, d), lambda i: (i, 0)),  # eps: streamed
                pl.BlockSpec((1, d), lambda i: (0, 0)),     # loc: resident
                pl.BlockSpec((1, d), lambda i: (0, 0)),     # log_scale: resident
            ],
            out_specs=(
                pl.BlockSpec((tile, d), lambda i: (i, 0)),  # z
                pl.BlockSpec((tile, 1), lambda i: (i, 0)),  # log_p
            ),
        ),
        compiler_params=pltpu.CompilerParams(
            dimension_semantics=("parallel",),  # batch axis -> both v7x TCs
        ),
    )(eps2d, loc2d, ls2d)

    z = z2d[:n].reshape((n,) + event_shape)
    log_p = logp2d[:n].reshape(n)
    return z, log_p


if __name__ == "__main__":
    key = jax.random.PRNGKey(0)

    # Module config: DiagGaussian(shape=(4, 16, 16)), trainable params.
    event_shape = (4, 16, 16)
    num_samples = 2

    # Deterministic parameter init. nn.Parameter(torch.zeros(...)) -> zeros,
    # but small nonzero values are used so the kernel math is exercised.
    d = 4 * 16 * 16
    loc = (jnp.arange(d, dtype=jnp.float32).reshape((1,) + event_shape) / d - 0.5) * 0.1
    log_scale = jnp.full((1,) + event_shape, -0.2, dtype=jnp.float32)

    # eps ~ N(0, 1), as torch.randn in the module's forward.
    eps = jax.random.normal(key, (num_samples,) + event_shape, dtype=jnp.float32)

    z, log_p = diag_gaussian_forward(eps, loc, log_scale)
    jax.block_until_ready((z, log_p))

    # Reference check against plain-JAX math (same semantics as the torch code).
    z_ref = loc + jnp.exp(log_scale) * eps
    logp_ref = (
        -0.5 * d * math.log(2.0 * math.pi)
        - jnp.sum(log_scale + 0.5 * eps ** 2, axis=(1, 2, 3))
    )
    assert z.shape == (num_samples,) + event_shape
    assert log_p.shape == (num_samples,)
    assert jnp.allclose(z, z_ref, atol=1e-5, rtol=1e-5)
    assert jnp.allclose(log_p, logp_ref, atol=1e-3, rtol=1e-5)

    print("KERNEL_OK")
</pallas_src>

<mosaic_0001>
module attributes {stable_mosaic.version = 11 : i64} {
  func.func @_diag_gaussian_kernel(%arg0: i32, %arg1: memref<8x1024xf32, #tpu.memory_space<vmem>>, %arg2: memref<1x1024xf32, #tpu.memory_space<vmem>>, %arg3: memref<1x1024xf32, #tpu.memory_space<vmem>>, %arg4: memref<8x1024xf32, #tpu.memory_space<vmem>>, %arg5: memref<8x1xf32, #tpu.memory_space<vmem>>) attributes {dimension_semantics = [#tpu.dimension_semantics<parallel>], iteration_bounds = array<i64: 1>, scalar_prefetch = 0 : i64, scratch_operands = 0 : i64, tpu.core_type = #tpu.core_type<tc>, window_params = [{transform_indices = @transform_0, window_bounds = array<i64: 8, 1024>}, {pipeline_mode = #tpu.pipeline_mode<synchronous>, transform_indices = @transform_1, window_bounds = array<i64: 1, 1024>}, {pipeline_mode = #tpu.pipeline_mode<synchronous>, transform_indices = @transform_2, window_bounds = array<i64: 1, 1024>}, {transform_indices = @transform_3, window_bounds = array<i64: 8, 1024>}, {transform_indices = @transform_4, window_bounds = array<i64: 8, 1>}]} {
    %c0 = arith.constant 0 : index
    %c0_0 = arith.constant 0 : index
    %0 = vector.load %arg1[%c0, %c0_0] : memref<8x1024xf32, #tpu.memory_space<vmem>>, vector<8x1024xf32>
    %c0_1 = arith.constant 0 : index
    %c0_2 = arith.constant 0 : index
    %1 = vector.load %arg2[%c0_1, %c0_2] : memref<1x1024xf32, #tpu.memory_space<vmem>>, vector<1x1024xf32>
    %c0_3 = arith.constant 0 : index
    %c0_4 = arith.constant 0 : index
    %2 = vector.load %arg3[%c0_3, %c0_4] : memref<1x1024xf32, #tpu.memory_space<vmem>>, vector<1x1024xf32>
    %3 = math.exp %2 : vector<1x1024xf32>
    %4 = vector.broadcast %3 : vector<1x1024xf32> to vector<8x1024xf32>
    %5 = arith.mulf %4, %0 : vector<8x1024xf32>
    %6 = vector.broadcast %1 : vector<1x1024xf32> to vector<8x1024xf32>
    %7 = arith.addf %6, %5 : vector<8x1024xf32>
    %c0_5 = arith.constant 0 : index
    %c0_6 = arith.constant 0 : index
    %8 = vector.load %arg4[%c0_5, %c0_6] : memref<8x1024xf32, #tpu.memory_space<vmem>>, vector<8x1024xf32>
    tpu.vector_store %arg4[%c0_5, %c0_6], %7 {strides = array<i32>} : memref<8x1024xf32, #tpu.memory_space<vmem>>, vector<8x1024xf32>,
    %9 = vector.shape_cast %2 : vector<1x1024xf32> to vector<1x1x1024xf32>
    %cst = arith.constant dense<0.000000e+00> : vector<1xf32>
    %10 = vector.multi_reduction <add>, %9, %cst [1, 2] : vector<1x1x1024xf32> to vector<1xf32>
    %11 = vector.shape_cast %10 : vector<1xf32> to vector<1x1x1xf32>
    %12 = vector.extract %11[0, 0, 0] : f32 from vector<1x1x1xf32>
    %cst_7 = arith.constant -940.993041 : f32
    %13 = arith.subf %cst_7, %12 : f32
    %14 = arith.mulf %0, %0 : vector<8x1024xf32>
    %cst_8 = arith.constant dense<0.000000e+00> : vector<8xf32>
    %15 = vector.multi_reduction <add>, %14, %cst_8 [1] : vector<8x1024xf32> to vector<8xf32>
    %16 = vector.shape_cast %15 : vector<8xf32> to vector<8x1xf32>
    %cst_9 = arith.constant 5.000000e-01 : f32
    %17 = vector.broadcast %cst_9 : f32 to vector<8x1xf32>
    %18 = arith.mulf %17, %16 : vector<8x1xf32>
    %19 = vector.broadcast %13 : f32 to vector<8x1xf32>
    %20 = arith.subf %19, %18 : vector<8x1xf32>
    %c0_10 = arith.constant 0 : index
    %c0_11 = arith.constant 0 : index
    %21 = vector.load %arg5[%c0_10, %c0_11] : memref<8x1xf32, #tpu.memory_space<vmem>>, vector<8x1xf32>
    tpu.vector_store %arg5[%c0_10, %c0_11], %20 {strides = array<i32>} : memref<8x1xf32, #tpu.memory_space<vmem>>, vector<8x1xf32>,
    return
  }
  func.func @transform_0(%arg0: i32) -> (i32, i32) {
    %c0_i32 = arith.constant 0 : i32
    %c0_i32_0 = arith.constant 0 : i32
    return %arg0, %c0_i32 : i32, i32
  }
  func.func @transform_1(%arg0: i32) -> (i32, i32) {
    %c0_i32 = arith.constant 0 : i32
    %c0_i32_0 = arith.constant 0 : i32
    %c0_i32_1 = arith.constant 0 : i32
    return %c0_i32, %c0_i32_0 : i32, i32
  }
  func.func @transform_2(%arg0: i32) -> (i32, i32) {
    %c0_i32 = arith.constant 0 : i32
    %c0_i32_0 = arith.constant 0 : i32
    %c0_i32_1 = arith.constant 0 : i32
    return %c0_i32, %c0_i32_0 : i32, i32
  }
  func.func @transform_3(%arg0: i32) -> (i32, i32) {
    %c0_i32 = arith.constant 0 : i32
    %c0_i32_0 = arith.constant 0 : i32
    return %arg0, %c0_i32 : i32, i32
  }
  func.func @transform_4(%arg0: i32) -> (i32, i32) {
    %c0_i32 = arith.constant 0 : i32
    %c0_i32_0 = arith.constant 0 : i32
    return %arg0, %c0_i32 : i32, i32
  }
}

</mosaic_0001>

<llo_original>
// kernel: tpu_custom_call.1
$region0: #{tpu_custom_call.1}
  #allocation0 [shape = 'u32[]', space=smem, size = 0x4, offset = 0x4, fixed_abs, tag = 'smem constant byte address 0x4 - core index']
  #allocation1 [shape = 'u32[72,128]{1,0:T(1,128)}', space=vmem, size = 0x9000, scoped, tag = 'internal scratch']
  %s0 = inlined_call_operand.hbm [shape: f32[8,1024], index: 0, kind: input, shape index: {}]
  %s1 = inlined_call_operand.hbm [shape: f32[1,1024], index: 1, kind: input, shape index: {}]
  %s2 = inlined_call_operand.hbm [shape: f32[1,1024], index: 2, kind: input, shape index: {}]
  %s3 = inlined_call_operand.hbm [shape: f32[8,1024], index: 3, kind: output, shape index: {0}]
  %s4 = inlined_call_operand.vmem [shape: f32[8,1], index: 4, kind: output, shape index: {1}]
  %5 = xla_tuple %s3, %s4
  %s6 = sld [smem:[#allocation0]]
  $region42: #{tpu_custom_call.1} parent=0
    _
  %s8 = ssub.s32 1, %s6
  %s9 = scalar_select 0, %s8, %s6
  $region1: #{tpu_custom_call.1} parent=0
    #allocation2 [shape = 'u8[32768]{0}', space=vmem, size = 0x8000, scoped, tag = 'input window, operand 0, single buffered']
    #allocation3 [shape = 's32[1]{0}', space=sflag, size = 0x4, scoped, tag = 'scoped memory for tpu_custom_call.1']
    #allocation4 [shape = 's32[1]{0}', space=sflag, size = 0x4, scoped, tag = 'scoped memory for tpu_custom_call.1']
    #allocation5 [shape = 'u8[4096]{0}', space=vmem, size = 0x1000, scoped, tag = 'input window, operand 1, single buffered']
    #allocation6 [shape = 's32[1]{0}', space=sflag, size = 0x4, scoped, tag = 'scoped memory for tpu_custom_call.1']
    #allocation7 [shape = 'u8[4096]{0}', space=vmem, size = 0x1000, scoped, tag = 'input window, operand 2, single buffered']
    #allocation8 [shape = 'u8[32768]{0}', space=vmem, size = 0x8000, scoped, tag = 'output window, operand 0, single buffered']
    %10 = vsyncpa [#allocation3], 0
    %11 = vsyncpa [#allocation6], 0
    %12 = vsyncpa [#allocation4], 0
    // Predicated region
    $region2: #{tpu_custom_call.1} parent=1 // pred_check
      _
    $region3: #{tpu_custom_call.1} parent=1 // pred_check_branch
      %14 = sbr.rel (0) target = $region5
    $region4: #{tpu_custom_call.1} parent=1 // pred_region
      %16 = vsyncadd [#allocation3], 0
      %s18 = sshll.u32 %s0, 4
      %s19 = int_to_ptr.hbm [resolvable:$true] %s18
      %s20 = sshll.u32 [#allocation2], 4
      %s21 = int_to_ptr.vmem [resolvable:$true] %s20
      %23 = dma.hbm_to_vmem [thread:$0]  %s19, 1024, %s21, [#allocation3]
    $region5: #{tpu_custom_call.1} parent=1 // pred_fallthru
      _
    // Predicated region
    $region6: #{tpu_custom_call.1} parent=1 // pred_check
      _
    $region7: #{tpu_custom_call.1} parent=1 // pred_check_branch
      %25 = sbr.rel (0) target = $region9
    $region8: #{tpu_custom_call.1} parent=1 // pred_region
      %27 = vsyncadd [#allocation6], 0
      %s29 = sshll.u32 %s1, 4
      %s30 = int_to_ptr.hbm [resolvable:$true] %s29
      %s31 = sshll.u32 [#allocation5], 4
      %s32 = int_to_ptr.vmem [resolvable:$true] %s31
      %34 = dma.hbm_to_vmem [thread:$0]  %s30, 128, %s32, [#allocation6]
    $region9: #{tpu_custom_call.1} parent=1 // pred_fallthru
      _
    // Predicated region
    $region10: #{tpu_custom_call.1} parent=1 // pred_check
      _
    $region11: #{tpu_custom_call.1} parent=1 // pred_check_branch
      %36 = sbr.rel (0) target = $region13
    $region12: #{tpu_custom_call.1} parent=1 // pred_region
      %38 = vsyncadd [#allocation6], 0
      %s40 = sshll.u32 %s2, 4
      %s41 = int_to_ptr.hbm [resolvable:$true] %s40
      %s42 = sshll.u32 [#allocation7], 4
      %s43 = int_to_ptr.vmem [resolvable:$true] %s42
      %45 = dma.hbm_to_vmem [thread:$0]  %s41, 128, %s43, [#allocation6]
    $region13: #{tpu_custom_call.1} parent=1 // pred_fallthru
      _
    // Predicated region
    $region14: #{tpu_custom_call.1} parent=1 // pred_check
      _
    $region15: #{tpu_custom_call.1} parent=1 // pred_check_branch
      %47 = sbr.rel (0) target = $region17
    $region16: #{tpu_custom_call.1} parent=1 // pred_region
      %49 = dma.done [#allocation3], 1024
    $region17: #{tpu_custom_call.1} parent=1 // pred_fallthru
      _
    // Predicated region
    $region18: #{tpu_custom_call.1} parent=1 // pred_check
      _
    $region19: #{tpu_custom_call.1} parent=1 // pred_check_branch
      %51 = sbr.rel (0) target = $region21
    $region20: #{tpu_custom_call.1} parent=1 // pred_region
      %53 = dma.done [#allocation6], 128
    $region21: #{tpu_custom_call.1} parent=1 // pred_fallthru
      _
    // Predicated region
    $region22: #{tpu_custom_call.1} parent=1 // pred_check
      _
    $region23: #{tpu_custom_call.1} parent=1 // pred_check_branch
      %55 = sbr.rel (0) target = $region25
    $region24: #{tpu_custom_call.1} parent=1 // pred_region
      %57 = dma.done [#allocation6], 128
    $region25: #{tpu_custom_call.1} parent=1 // pred_fallthru
      _
    %v58 = vld [vmem:[#allocation2] sm:$0xff]
    %v59 = vld [vmem:[#allocation2 + $0x8] sm:$0xff]
    %v60 = vld [vmem:[#allocation2 + $0x10] sm:$0xff]
    %v61 = vld [vmem:[#allocation2 + $0x18] sm:$0xff]
    %v62 = vld [vmem:[#allocation2 + $0x20] sm:$0xff]
    %v63 = vld [vmem:[#allocation2 + $0x28] sm:$0xff]
    %v64 = vld [vmem:[#allocation2 + $0x30] sm:$0xff]
    %v65 = vld [vmem:[#allocation2 + $0x38] sm:$0xff]
    %v66 = vld [vmem:[#allocation5] sm:$0xff]
    %v67 = vld [vmem:[#allocation7] sm:$0xff]
    %v68 = vmul.f32 %v67, 1.442695
    %v69 = vpow.pop %v68
    %v71 = vperm.slane %v69, 0
    %v72 = vperm.slane %v69, 1
    %v73 = vperm.slane %v69, 2
    %v74 = vperm.slane %v69, 3
    %v75 = vperm.slane %v69, 4
    %v76 = vperm.slane %v69, 5
    %v77 = vperm.slane %v69, 6
    %v78 = vperm.slane %v69, 7
    %v87 = vmul.f32 %v71, %v58
    %v88 = vmul.f32 %v72, %v59
    %v89 = vmul.f32 %v73, %v60
    %v90 = vmul.f32 %v74, %v61
    %v91 = vmul.f32 %v75, %v62
    %v92 = vmul.f32 %v76, %v63
    %v93 = vmul.f32 %v77, %v64
    %v94 = vmul.f32 %v78, %v65
    %v96 = vperm.slane %v66, 0
    %v97 = vperm.slane %v66, 1
    %v98 = vperm.slane %v66, 2
    %v99 = vperm.slane %v66, 3
    %v100 = vperm.slane %v66, 4
    %v101 = vperm.slane %v66, 5
    %v102 = vperm.slane %v66, 6
    %v103 = vperm.slane %v66, 7
    %v112 = vadd.f32 %v96, %v87
    %v113 = vadd.f32 %v97, %v88
    %v114 = vadd.f32 %v98, %v89
    %v115 = vadd.f32 %v99, %v90
    %v116 = vadd.f32 %v100, %v91
    %v117 = vadd.f32 %v101, %v92
    %v118 = vadd.f32 %v102, %v93
    %v119 = vadd.f32 %v103, %v94
    %120 = vst [vmem:[#allocation8] sm:$0xff] %v112
    %121 = vst [vmem:[#allocation8 + $0x8] sm:$0xff] %v113
    %122 = vst [vmem:[#allocation8 + $0x10] sm:$0xff] %v114
    %123 = vst [vmem:[#allocation8 + $0x18] sm:$0xff] %v115
    %124 = vst [vmem:[#allocation8 + $0x20] sm:$0xff] %v116
    %125 = vst [vmem:[#allocation8 + $0x28] sm:$0xff] %v117
    %126 = vst [vmem:[#allocation8 + $0x30] sm:$0xff] %v118
    %127 = vst [vmem:[#allocation8 + $0x38] sm:$0xff] %v119
    %v129 = vperm.slane %v67, 0
    %v130 = vperm.slane %v67, 1
    %v131 = vperm.slane %v67, 2
    %v132 = vperm.slane %v67, 3
    %v133 = vperm.slane %v67, 4
    %v134 = vperm.slane %v67, 5
    %v135 = vperm.slane %v67, 6
    %v136 = vperm.slane %v67, 7
    %vm145 = vcmask 1040384
    %v146 = vsel %vm145, %v129, 0.0
    %v147 = vsel %vm145, %v130, 0.0
    %v148 = vadd.f32 %v146, %v147
    %v149 = vsel %vm145, %v131, 0.0
    %v150 = vadd.f32 %v148, %v149
    %v151 = vsel %vm145, %v132, 0.0
    %v152 = vadd.f32 %v150, %v151
    %v153 = vsel %vm145, %v133, 0.0
    %v154 = vadd.f32 %v152, %v153
    %v155 = vsel %vm145, %v134, 0.0
    %v156 = vadd.f32 %v154, %v155
    %v157 = vsel %vm145, %v135, 0.0
    %v158 = vadd.f32 %v156, %v157
    %v159 = vsel %vm145, %v136, 0.0
    %v160 = vadd.f32 %v158, %v159
    %161 = vadd.xlane.f32.xlu0 %v160
    %v162 = vpop.xlane.xlu0 %161
    %v163 = vrot.slane %v162, 4
    %v164 = vadd.f32 %v162, %v163
    %v165 = vrot.slane %v164, 2
    %v166 = vadd.f32 %v164, %v165
    %v167 = vrot.slane %v166, 1
    %v168 = vadd.f32 %v166, %v167
    %s169 = vtos %v168
    %s170 = ssub.f32 -940.99304, %s169
    %v171 = vmul.f32 %v58, %v58
    %v172 = vmul.f32 %v59, %v59
    %v173 = vmul.f32 %v60, %v60
    %v174 = vmul.f32 %v61, %v61
    %v175 = vmul.f32 %v62, %v62
    %v176 = vmul.f32 %v63, %v63
    %v177 = vmul.f32 %v64, %v64
    %v178 = vmul.f32 %v65, %v65
    %v179 = vadd.f32 %v171, %v172
    %v180 = vadd.f32 %v179, %v173
    %v181 = vadd.f32 %v180, %v174
    %v182 = vadd.f32 %v181, %v175
    %v183 = vadd.f32 %v182, %v176
    %v184 = vadd.f32 %v183, %v177
    %v185 = vadd.f32 %v184, %v178
    %186 = vadd.xlane.f32.xlu0 %v185
    %v187 = vpop.xlane.xlu0 %186
    %v188 = vmul.f32 %v187, 0.5
    %v189 = vstv %s170
    %v190 = vsub.f32 %v189, %v188
    %vm191 = vcmask 7168
    %192 = vst.msk [vmem:[%s4] sm:$0xff] %vm191, %v190
    // Predicated region
    $region26: #{tpu_custom_call.1} parent=1 // pred_check
      _
    $region27: #{tpu_custom_call.1} parent=1 // pred_check_branch
      %194 = sbr.rel (0) target = $region29
    $region28: #{tpu_custom_call.1} parent=1 // pred_region
      %196 = vsyncadd [#allocation4], 0
      %s198 = sshll.u32 [#allocation8], 4
      %s199 = int_to_ptr.vmem [resolvable:$true] %s198
      %s200 = sshll.u32 %s3, 4
      %s201 = int_to_ptr.hbm [resolvable:$true] %s200
      %203 = dma.vmem_to_hbm [thread:$0]  %s199, 1024, %s201, [#allocation4]
    $region29: #{tpu_custom_call.1} parent=1 // pred_fallthru
      _
    // Predicated region
    $region30: #{tpu_custom_call.1} parent=1 // pred_check
      _
    $region31: #{tpu_custom_call.1} parent=1 // pred_check_branch
      %205 = sbr.rel (0) target = $region33
    $region32: #{tpu_custom_call.1} parent=1 // pred_region
      _
    $region33: #{tpu_custom_call.1} parent=1 // pred_fallthru
      _
    // Predicated region
    $region34: #{tpu_custom_call.1} parent=1 // pred_check
      _
    $region35: #{tpu_custom_call.1} parent=1 // pred_check_branch
      %207 = sbr.rel (0) target = $region37
    $region36: #{tpu_custom_call.1} parent=1 // pred_region
      %209 = dma.done [#allocation4], 1024
    $region37: #{tpu_custom_call.1} parent=1 // pred_fallthru
      _
    // Predicated region
    $region38: #{tpu_custom_call.1} parent=1 // pred_check
      _
    $region39: #{tpu_custom_call.1} parent=1 // pred_check_branch
      %211 = sbr.rel (0) target = $region41
    $region40: #{tpu_custom_call.1} parent=1 // pred_region
      _
    $region41: #{tpu_custom_call.1} parent=1 // pred_fallthru
      _
    %212 = vsyncpa [#allocation3], 1
    %213 = vsyncpa [#allocation6], 1
    %214 = vsyncpa [#allocation4], 1

</llo_original>
